<compile_context>
chip_gen: v7x
topology: tpu7x:2x2x1
jax: 0.10.0
libtpu: 0.0.40
codegen_flags: <defaults>
</compile_context>

<pallas_src>
import jax
import jax.numpy as jnp
from jax.experimental import pallas as pl
from jax.experimental.pallas import tpu as pltpu


def rnn_kernel(x_ref, p_ref, o_ref):
    """Full forward pass, all operands VMEM-resident.

    x_ref: (T, 1, B_pad)  time-major input, batch on the lane (minor) axis
    p_ref: (H, H+4)       packed params: [W_hh | W_ih | b_ih+b_hh | W_fc^T | b_fc]
    o_ref: (1, B_pad)     lane-dense output
    """
    T = x_ref.shape[0]
    H = p_ref.shape[0]

    # Static slices of the packed parameter tile (zero-cost views).
    whh_cols = [p_ref[:, j:j + 1] for j in range(H)]   # each (H, 1): column j of W_hh
    wih = p_ref[:, H:H + 1]                            # (H, 1)
    bias = p_ref[:, H + 1:H + 2]                       # (H, 1)  b_ih + b_hh fused
    wfc = p_ref[:, H + 2:H + 3]                        # (H, 1)  W_fc^T
    bfc = p_ref[0:1, H + 3:H + 4]                      # (1, 1)

    # Input projection + bias for every timestep in one fused VPU prologue
    # (I == 1, so x_t @ W_ih^T is a broadcast multiply); independent of h.
    xb_all = x_ref[...] * wih[None, :, :] + bias[None, :, :]      # (T, H, B)

    # Recurrence, fully unrolled (T static), hidden state register-resident.
    # h_0 = 0 (PyTorch default) => first step is just tanh of the projection.
    h = jnp.tanh(xb_all[0])                                       # (H, B)
    for t in range(1, T):
        acc = xb_all[t]
        for j in range(H):                                        # W_hh @ h as H
            acc = acc + whh_cols[j] * h[j:j + 1, :]               # rank-1 VPU MACs
        h = jnp.tanh(acc)

    # Epilogue: relu -> Linear(5, 1) as VPU multiply + sublane (XLU) reduce.
    h_relu = jnp.maximum(h, 0.0)                                  # (H, B)
    out = jnp.sum(h_relu * wfc, axis=0, keepdims=True) + bfc      # (1, B)
    o_ref[...] = out.astype(o_ref.dtype)


def rnn_model_forward(x, params):
    """x: (B, T, 1) batch-first f32; params: (W_ih, W_hh, b_ih, b_hh, W_fc, b_fc).

    Returns (B, 1), matching the PyTorch module.
    """
    B, T, I = x.shape
    assert I == 1, "module is defined with input_size=1"
    W_ih, W_hh, b_ih, b_hh, W_fc, b_fc = params
    H = W_hh.shape[0]

    # Lane-dense batch: pad B up to a multiple of 128 (kernel cost is identical).
    B_pad = ((B + 127) // 128) * 128

    # Time-major, batch on the lane axis: (T, 1, B_pad).
    x_tm = jnp.transpose(x, (1, 2, 0)).astype(jnp.float32)        # (T, 1, B)
    x_tm = jnp.pad(x_tm, ((0, 0), (0, 0), (0, B_pad - B)))        # (T, 1, B_pad)

    # Pack every tiny parameter into ONE (H, H+4) operand -> one DMA descriptor.
    packed = jnp.concatenate(
        [
            W_hh.astype(jnp.float32),                                     # (H, H)
            W_ih.astype(jnp.float32).reshape(H, 1),                       # W_ih
            (b_ih + b_hh).astype(jnp.float32).reshape(H, 1),              # fused bias
            W_fc.astype(jnp.float32).reshape(H, 1),                       # W_fc^T
            jnp.broadcast_to(b_fc.astype(jnp.float32).reshape(1, 1), (H, 1)),  # b_fc
        ],
        axis=1,
    )                                                              # (H, H+4)

    vmem = pl.BlockSpec(memory_space=pltpu.MemorySpace.VMEM)
    out = pl.pallas_call(
        rnn_kernel,
        out_shape=jax.ShapeDtypeStruct((1, B_pad), jnp.float32),
        in_specs=[vmem, vmem],
        out_specs=vmem,
    )(x_tm, packed)
    # TODO(synk): for large B/T, tile the batch on a parallel grid axis instead of
    # full VMEM residency (required on v7x: 2 TensorCores, 64 MiB VMEM).
    return out[:, :B].T                                            # (B, 1)


def init_params(key, input_size=1, hidden_size=5):
    """Deterministic init mimicking PyTorch's U(-1/sqrt(H), 1/sqrt(H))."""
    ks = jax.random.split(key, 6)
    k_rnn = 1.0 / jnp.sqrt(hidden_size)
    k_fc = 1.0 / jnp.sqrt(hidden_size)
    W_ih = jax.random.uniform(ks[0], (hidden_size, input_size), jnp.float32, -k_rnn, k_rnn)
    W_hh = jax.random.uniform(ks[1], (hidden_size, hidden_size), jnp.float32, -k_rnn, k_rnn)
    b_ih = jax.random.uniform(ks[2], (hidden_size,), jnp.float32, -k_rnn, k_rnn)
    b_hh = jax.random.uniform(ks[3], (hidden_size,), jnp.float32, -k_rnn, k_rnn)
    W_fc = jax.random.uniform(ks[4], (1, hidden_size), jnp.float32, -k_fc, k_fc)
    b_fc = jax.random.uniform(ks[5], (1,), jnp.float32, -k_fc, k_fc)
    return (W_ih, W_hh, b_ih, b_hh, W_fc, b_fc)


def reference_forward(x, params):
    """Pure-JAX reference mirroring the PyTorch forward."""
    W_ih, W_hh, b_ih, b_hh, W_fc, b_fc = params
    B, T, I = x.shape
    H = W_hh.shape[0]
    h = jnp.zeros((B, H), jnp.float32)
    for t in range(T):
        h = jnp.tanh(x[:, t, :] @ W_ih.T + b_ih + h @ W_hh.T + b_hh)
    return jnp.maximum(h, 0.0) @ W_fc.T + b_fc


if __name__ == "__main__":
    key = jax.random.PRNGKey(0)
    k_x, k_p = jax.random.split(key)

    B, T, I = 2, 8, 1          # batch=2, seq=8, input_size=1 (as the module implies)
    x = jax.random.normal(k_x, (B, T, I), dtype=jnp.float32)
    params = init_params(k_p)

    out = rnn_model_forward(x, params)
    out = jax.block_until_ready(out)

    ref = reference_forward(x, params)
    assert out.shape == (B, 1)
    assert jnp.allclose(out, ref, atol=1e-5, rtol=1e-5), (out, ref)

    print("KERNEL_OK")
</pallas_src>

<mosaic_0001>
module attributes {stable_mosaic.version = 11 : i64} {
  func.func @rnn_kernel(%arg0: memref<8x1x128xf32, #tpu.memory_space<vmem>>, %arg1: memref<5x9xf32, #tpu.memory_space<vmem>>, %arg2: memref<1x128xf32, #tpu.memory_space<vmem>>) attributes {dimension_semantics = [], scalar_prefetch = 0 : i64, scratch_operands = 0 : i64, tpu.core_type = #tpu.core_type<tc>} {
    %c0 = arith.constant 0 : index
    %c0_0 = arith.constant 0 : index
    %0 = vector.load %arg1[%c0, %c0_0] : memref<5x9xf32, #tpu.memory_space<vmem>>, vector<5x1xf32>
    %c0_1 = arith.constant 0 : index
    %c1 = arith.constant 1 : index
    %1 = vector.load %arg1[%c0_1, %c1] : memref<5x9xf32, #tpu.memory_space<vmem>>, vector<5x1xf32>
    %c0_2 = arith.constant 0 : index
    %c2 = arith.constant 2 : index
    %2 = vector.load %arg1[%c0_2, %c2] : memref<5x9xf32, #tpu.memory_space<vmem>>, vector<5x1xf32>
    %c0_3 = arith.constant 0 : index
    %c3 = arith.constant 3 : index
    %3 = vector.load %arg1[%c0_3, %c3] : memref<5x9xf32, #tpu.memory_space<vmem>>, vector<5x1xf32>
    %c0_4 = arith.constant 0 : index
    %c4 = arith.constant 4 : index
    %4 = vector.load %arg1[%c0_4, %c4] : memref<5x9xf32, #tpu.memory_space<vmem>>, vector<5x1xf32>
    %c0_5 = arith.constant 0 : index
    %c5 = arith.constant 5 : index
    %5 = vector.load %arg1[%c0_5, %c5] : memref<5x9xf32, #tpu.memory_space<vmem>>, vector<5x1xf32>
    %c0_6 = arith.constant 0 : index
    %c6 = arith.constant 6 : index
    %6 = vector.load %arg1[%c0_6, %c6] : memref<5x9xf32, #tpu.memory_space<vmem>>, vector<5x1xf32>
    %c0_7 = arith.constant 0 : index
    %c7 = arith.constant 7 : index
    %7 = vector.load %arg1[%c0_7, %c7] : memref<5x9xf32, #tpu.memory_space<vmem>>, vector<5x1xf32>
    %c0_8 = arith.constant 0 : index
    %c8 = arith.constant 8 : index
    %8 = vector.load %arg1[%c0_8, %c8] : memref<5x9xf32, #tpu.memory_space<vmem>>, vector<1x1xf32>
    %c0_9 = arith.constant 0 : index
    %c0_10 = arith.constant 0 : index
    %c0_11 = arith.constant 0 : index
    %9 = vector.load %arg0[%c0_9, %c0_10, %c0_11] : memref<8x1x128xf32, #tpu.memory_space<vmem>>, vector<8x1x128xf32>
    %10 = vector.shape_cast %5 : vector<5x1xf32> to vector<1x5x1xf32>
    %11 = vector.broadcast %9 : vector<8x1x128xf32> to vector<8x5x128xf32>
    %12 = vector.broadcast %10 : vector<1x5x1xf32> to vector<8x5x128xf32>
    %13 = arith.mulf %11, %12 : vector<8x5x128xf32>
    %14 = vector.shape_cast %6 : vector<5x1xf32> to vector<1x5x1xf32>
    %15 = vector.broadcast %14 : vector<1x5x1xf32> to vector<8x5x128xf32>
    %16 = arith.addf %13, %15 : vector<8x5x128xf32>
    %17 = vector.extract_strided_slice %16 {offsets = [0, 0, 0], sizes = [1, 5, 128], strides = [1, 1, 1]} : vector<8x5x128xf32> to vector<1x5x128xf32>
    %18 = vector.shape_cast %17 : vector<1x5x128xf32> to vector<5x128xf32>
    %19 = math.tanh %18 : vector<5x128xf32>
    %20 = vector.extract_strided_slice %16 {offsets = [1, 0, 0], sizes = [1, 5, 128], strides = [1, 1, 1]} : vector<8x5x128xf32> to vector<1x5x128xf32>
    %21 = vector.shape_cast %20 : vector<1x5x128xf32> to vector<5x128xf32>
    %22 = vector.extract_strided_slice %19 {offsets = [0, 0], sizes = [1, 128], strides = [1, 1]} : vector<5x128xf32> to vector<1x128xf32>
    %23 = vector.broadcast %0 : vector<5x1xf32> to vector<5x128xf32>
    %24 = vector.broadcast %22 : vector<1x128xf32> to vector<5x128xf32>
    %25 = arith.mulf %23, %24 : vector<5x128xf32>
    %26 = arith.addf %21, %25 : vector<5x128xf32>
    %27 = vector.extract_strided_slice %19 {offsets = [1, 0], sizes = [1, 128], strides = [1, 1]} : vector<5x128xf32> to vector<1x128xf32>
    %28 = vector.broadcast %1 : vector<5x1xf32> to vector<5x128xf32>
    %29 = vector.broadcast %27 : vector<1x128xf32> to vector<5x128xf32>
    %30 = arith.mulf %28, %29 : vector<5x128xf32>
    %31 = arith.addf %26, %30 : vector<5x128xf32>
    %32 = vector.extract_strided_slice %19 {offsets = [2, 0], sizes = [1, 128], strides = [1, 1]} : vector<5x128xf32> to vector<1x128xf32>
    %33 = vector.broadcast %2 : vector<5x1xf32> to vector<5x128xf32>
    %34 = vector.broadcast %32 : vector<1x128xf32> to vector<5x128xf32>
    %35 = arith.mulf %33, %34 : vector<5x128xf32>
    %36 = arith.addf %31, %35 : vector<5x128xf32>
    %37 = vector.extract_strided_slice %19 {offsets = [3, 0], sizes = [1, 128], strides = [1, 1]} : vector<5x128xf32> to vector<1x128xf32>
    %38 = vector.broadcast %3 : vector<5x1xf32> to vector<5x128xf32>
    %39 = vector.broadcast %37 : vector<1x128xf32> to vector<5x128xf32>
    %40 = arith.mulf %38, %39 : vector<5x128xf32>
    %41 = arith.addf %36, %40 : vector<5x128xf32>
    %42 = vector.extract_strided_slice %19 {offsets = [4, 0], sizes = [1, 128], strides = [1, 1]} : vector<5x128xf32> to vector<1x128xf32>
    %43 = vector.broadcast %4 : vector<5x1xf32> to vector<5x128xf32>
    %44 = vector.broadcast %42 : vector<1x128xf32> to vector<5x128xf32>
    %45 = arith.mulf %43, %44 : vector<5x128xf32>
    %46 = arith.addf %41, %45 : vector<5x128xf32>
    %47 = math.tanh %46 : vector<5x128xf32>
    %48 = vector.extract_strided_slice %16 {offsets = [2, 0, 0], sizes = [1, 5, 128], strides = [1, 1, 1]} : vector<8x5x128xf32> to vector<1x5x128xf32>
    %49 = vector.shape_cast %48 : vector<1x5x128xf32> to vector<5x128xf32>
    %50 = vector.extract_strided_slice %47 {offsets = [0, 0], sizes = [1, 128], strides = [1, 1]} : vector<5x128xf32> to vector<1x128xf32>
    %51 = vector.broadcast %0 : vector<5x1xf32> to vector<5x128xf32>
    %52 = vector.broadcast %50 : vector<1x128xf32> to vector<5x128xf32>
    %53 = arith.mulf %51, %52 : vector<5x128xf32>
    %54 = arith.addf %49, %53 : vector<5x128xf32>
    %55 = vector.extract_strided_slice %47 {offsets = [1, 0], sizes = [1, 128], strides = [1, 1]} : vector<5x128xf32> to vector<1x128xf32>
    %56 = vector.broadcast %1 : vector<5x1xf32> to vector<5x128xf32>
    %57 = vector.broadcast %55 : vector<1x128xf32> to vector<5x128xf32>
    %58 = arith.mulf %56, %57 : vector<5x128xf32>
    %59 = arith.addf %54, %58 : vector<5x128xf32>
    %60 = vector.extract_strided_slice %47 {offsets = [2, 0], sizes = [1, 128], strides = [1, 1]} : vector<5x128xf32> to vector<1x128xf32>
    %61 = vector.broadcast %2 : vector<5x1xf32> to vector<5x128xf32>
    %62 = vector.broadcast %60 : vector<1x128xf32> to vector<5x128xf32>
    %63 = arith.mulf %61, %62 : vector<5x128xf32>
    %64 = arith.addf %59, %63 : vector<5x128xf32>
    %65 = vector.extract_strided_slice %47 {offsets = [3, 0], sizes = [1, 128], strides = [1, 1]} : vector<5x128xf32> to vector<1x128xf32>
    %66 = vector.broadcast %3 : vector<5x1xf32> to vector<5x128xf32>
    %67 = vector.broadcast %65 : vector<1x128xf32> to vector<5x128xf32>
    %68 = arith.mulf %66, %67 : vector<5x128xf32>
    %69 = arith.addf %64, %68 : vector<5x128xf32>
    %70 = vector.extract_strided_slice %47 {offsets = [4, 0], sizes = [1, 128], strides = [1, 1]} : vector<5x128xf32> to vector<1x128xf32>
    %71 = vector.broadcast %4 : vector<5x1xf32> to vector<5x128xf32>
    %72 = vector.broadcast %70 : vector<1x128xf32> to vector<5x128xf32>
    %73 = arith.mulf %71, %72 : vector<5x128xf32>
    %74 = arith.addf %69, %73 : vector<5x128xf32>
    %75 = math.tanh %74 : vector<5x128xf32>
    %76 = vector.extract_strided_slice %16 {offsets = [3, 0, 0], sizes = [1, 5, 128], strides = [1, 1, 1]} : vector<8x5x128xf32> to vector<1x5x128xf32>
    %77 = vector.shape_cast %76 : vector<1x5x128xf32> to vector<5x128xf32>
    %78 = vector.extract_strided_slice %75 {offsets = [0, 0], sizes = [1, 128], strides = [1, 1]} : vector<5x128xf32> to vector<1x128xf32>
    %79 = vector.broadcast %0 : vector<5x1xf32> to vector<5x128xf32>
    %80 = vector.broadcast %78 : vector<1x128xf32> to vector<5x128xf32>
    %81 = arith.mulf %79, %80 : vector<5x128xf32>
    %82 = arith.addf %77, %81 : vector<5x128xf32>
    %83 = vector.extract_strided_slice %75 {offsets = [1, 0], sizes = [1, 128], strides = [1, 1]} : vector<5x128xf32> to vector<1x128xf32>
    %84 = vector.broadcast %1 : vector<5x1xf32> to vector<5x128xf32>
    %85 = vector.broadcast %83 : vector<1x128xf32> to vector<5x128xf32>
    %86 = arith.mulf %84, %85 : vector<5x128xf32>
    %87 = arith.addf %82, %86 : vector<5x128xf32>
    %88 = vector.extract_strided_slice %75 {offsets = [2, 0], sizes = [1, 128], strides = [1, 1]} : vector<5x128xf32> to vector<1x128xf32>
    %89 = vector.broadcast %2 : vector<5x1xf32> to vector<5x128xf32>
    %90 = vector.broadcast %88 : vector<1x128xf32> to vector<5x128xf32>
    %91 = arith.mulf %89, %90 : vector<5x128xf32>
    %92 = arith.addf %87, %91 : vector<5x128xf32>
    %93 = vector.extract_strided_slice %75 {offsets = [3, 0], sizes = [1, 128], strides = [1, 1]} : vector<5x128xf32> to vector<1x128xf32>
    %94 = vector.broadcast %3 : vector<5x1xf32> to vector<5x128xf32>
    %95 = vector.broadcast %93 : vector<1x128xf32> to vector<5x128xf32>
    %96 = arith.mulf %94, %95 : vector<5x128xf32>
    %97 = arith.addf %92, %96 : vector<5x128xf32>
    %98 = vector.extract_strided_slice %75 {offsets = [4, 0], sizes = [1, 128], strides = [1, 1]} : vector<5x128xf32> to vector<1x128xf32>
    %99 = vector.broadcast %4 : vector<5x1xf32> to vector<5x128xf32>
    %100 = vector.broadcast %98 : vector<1x128xf32> to vector<5x128xf32>
    %101 = arith.mulf %99, %100 : vector<5x128xf32>
    %102 = arith.addf %97, %101 : vector<5x128xf32>
    %103 = math.tanh %102 : vector<5x128xf32>
    %104 = vector.extract_strided_slice %16 {offsets = [4, 0, 0], sizes = [1, 5, 128], strides = [1, 1, 1]} : vector<8x5x128xf32> to vector<1x5x128xf32>
    %105 = vector.shape_cast %104 : vector<1x5x128xf32> to vector<5x128xf32>
    %106 = vector.extract_strided_slice %103 {offsets = [0, 0], sizes = [1, 128], strides = [1, 1]} : vector<5x128xf32> to vector<1x128xf32>
    %107 = vector.broadcast %0 : vector<5x1xf32> to vector<5x128xf32>
    %108 = vector.broadcast %106 : vector<1x128xf32> to vector<5x128xf32>
    %109 = arith.mulf %107, %108 : vector<5x128xf32>
    %110 = arith.addf %105, %109 : vector<5x128xf32>
    %111 = vector.extract_strided_slice %103 {offsets = [1, 0], sizes = [1, 128], strides = [1, 1]} : vector<5x128xf32> to vector<1x128xf32>
    %112 = vector.broadcast %1 : vector<5x1xf32> to vector<5x128xf32>
    %113 = vector.broadcast %111 : vector<1x128xf32> to vector<5x128xf32>
    %114 = arith.mulf %112, %113 : vector<5x128xf32>
    %115 = arith.addf %110, %114 : vector<5x128xf32>
    %116 = vector.extract_strided_slice %103 {offsets = [2, 0], sizes = [1, 128], strides = [1, 1]} : vector<5x128xf32> to vector<1x128xf32>
    %117 = vector.broadcast %2 : vector<5x1xf32> to vector<5x128xf32>
    %118 = vector.broadcast %116 : vector<1x128xf32> to vector<5x128xf32>
    %119 = arith.mulf %117, %118 : vector<5x128xf32>
    %120 = arith.addf %115, %119 : vector<5x128xf32>
    %121 = vector.extract_strided_slice %103 {offsets = [3, 0], sizes = [1, 128], strides = [1, 1]} : vector<5x128xf32> to vector<1x128xf32>
    %122 = vector.broadcast %3 : vector<5x1xf32> to vector<5x128xf32>
    %123 = vector.broadcast %121 : vector<1x128xf32> to vector<5x128xf32>
    %124 = arith.mulf %122, %123 : vector<5x128xf32>
    %125 = arith.addf %120, %124 : vector<5x128xf32>
    %126 = vector.extract_strided_slice %103 {offsets = [4, 0], sizes = [1, 128], strides = [1, 1]} : vector<5x128xf32> to vector<1x128xf32>
    %127 = vector.broadcast %4 : vector<5x1xf32> to vector<5x128xf32>
    %128 = vector.broadcast %126 : vector<1x128xf32> to vector<5x128xf32>
    %129 = arith.mulf %127, %128 : vector<5x128xf32>
    %130 = arith.addf %125, %129 : vector<5x128xf32>
    %131 = math.tanh %130 : vector<5x128xf32>
    %132 = vector.extract_strided_slice %16 {offsets = [5, 0, 0], sizes = [1, 5, 128], strides = [1, 1, 1]} : vector<8x5x128xf32> to vector<1x5x128xf32>
    %133 = vector.shape_cast %132 : vector<1x5x128xf32> to vector<5x128xf32>
    %134 = vector.extract_strided_slice %131 {offsets = [0, 0], sizes = [1, 128], strides = [1, 1]} : vector<5x128xf32> to vector<1x128xf32>
    %135 = vector.broadcast %0 : vector<5x1xf32> to vector<5x128xf32>
    %136 = vector.broadcast %134 : vector<1x128xf32> to vector<5x128xf32>
    %137 = arith.mulf %135, %136 : vector<5x128xf32>
    %138 = arith.addf %133, %137 : vector<5x128xf32>
    %139 = vector.extract_strided_slice %131 {offsets = [1, 0], sizes = [1, 128], strides = [1, 1]} : vector<5x128xf32> to vector<1x128xf32>
    %140 = vector.broadcast %1 : vector<5x1xf32> to vector<5x128xf32>
    %141 = vector.broadcast %139 : vector<1x128xf32> to vector<5x128xf32>
    %142 = arith.mulf %140, %141 : vector<5x128xf32>
    %143 = arith.addf %138, %142 : vector<5x128xf32>
    %144 = vector.extract_strided_slice %131 {offsets = [2, 0], sizes = [1, 128], strides = [1, 1]} : vector<5x128xf32> to vector<1x128xf32>
    %145 = vector.broadcast %2 : vector<5x1xf32> to vector<5x128xf32>
    %146 = vector.broadcast %144 : vector<1x128xf32> to vector<5x128xf32>
    %147 = arith.mulf %145, %146 : vector<5x128xf32>
    %148 = arith.addf %143, %147 : vector<5x128xf32>
    %149 = vector.extract_strided_slice %131 {offsets = [3, 0], sizes = [1, 128], strides = [1, 1]} : vector<5x128xf32> to vector<1x128xf32>
    %150 = vector.broadcast %3 : vector<5x1xf32> to vector<5x128xf32>
    %151 = vector.broadcast %149 : vector<1x128xf32> to vector<5x128xf32>
    %152 = arith.mulf %150, %151 : vector<5x128xf32>
    %153 = arith.addf %148, %152 : vector<5x128xf32>
    %154 = vector.extract_strided_slice %131 {offsets = [4, 0], sizes = [1, 128], strides = [1, 1]} : vector<5x128xf32> to vector<1x128xf32>
    %155 = vector.broadcast %4 : vector<5x1xf32> to vector<5x128xf32>
    %156 = vector.broadcast %154 : vector<1x128xf32> to vector<5x128xf32>
    %157 = arith.mulf %155, %156 : vector<5x128xf32>
    %158 = arith.addf %153, %157 : vector<5x128xf32>
    %159 = math.tanh %158 : vector<5x128xf32>
    %160 = vector.extract_strided_slice %16 {offsets = [6, 0, 0], sizes = [1, 5, 128], strides = [1, 1, 1]} : vector<8x5x128xf32> to vector<1x5x128xf32>
    %161 = vector.shape_cast %160 : vector<1x5x128xf32> to vector<5x128xf32>
    %162 = vector.extract_strided_slice %159 {offsets = [0, 0], sizes = [1, 128], strides = [1, 1]} : vector<5x128xf32> to vector<1x128xf32>
    %163 = vector.broadcast %0 : vector<5x1xf32> to vector<5x128xf32>
    %164 = vector.broadcast %162 : vector<1x128xf32> to vector<5x128xf32>
    %165 = arith.mulf %163, %164 : vector<5x128xf32>
    %166 = arith.addf %161, %165 : vector<5x128xf32>
    %167 = vector.extract_strided_slice %159 {offsets = [1, 0], sizes = [1, 128], strides = [1, 1]} : vector<5x128xf32> to vector<1x128xf32>
    %168 = vector.broadcast %1 : vector<5x1xf32> to vector<5x128xf32>
    %169 = vector.broadcast %167 : vector<1x128xf32> to vector<5x128xf32>
    %170 = arith.mulf %168, %169 : vector<5x128xf32>
    %171 = arith.addf %166, %170 : vector<5x128xf32>
    %172 = vector.extract_strided_slice %159 {offsets = [2, 0], sizes = [1, 128], strides = [1, 1]} : vector<5x128xf32> to vector<1x128xf32>
    %173 = vector.broadcast %2 : vector<5x1xf32> to vector<5x128xf32>
    %174 = vector.broadcast %172 : vector<1x128xf32> to vector<5x128xf32>
    %175 = arith.mulf %173, %174 : vector<5x128xf32>
    %176 = arith.addf %171, %175 : vector<5x128xf32>
    %177 = vector.extract_strided_slice %159 {offsets = [3, 0], sizes = [1, 128], strides = [1, 1]} : vector<5x128xf32> to vector<1x128xf32>
    %178 = vector.broadcast %3 : vector<5x1xf32> to vector<5x128xf32>
    %179 = vector.broadcast %177 : vector<1x128xf32> to vector<5x128xf32>
    %180 = arith.mulf %178, %179 : vector<5x128xf32>
    %181 = arith.addf %176, %180 : vector<5x128xf32>
    %182 = vector.extract_strided_slice %159 {offsets = [4, 0], sizes = [1, 128], strides = [1, 1]} : vector<5x128xf32> to vector<1x128xf32>
    %183 = vector.broadcast %4 : vector<5x1xf32> to vector<5x128xf32>
    %184 = vector.broadcast %182 : vector<1x128xf32> to vector<5x128xf32>
    %185 = arith.mulf %183, %184 : vector<5x128xf32>
    %186 = arith.addf %181, %185 : vector<5x128xf32>
    %187 = math.tanh %186 : vector<5x128xf32>
    %188 = vector.extract_strided_slice %16 {offsets = [7, 0, 0], sizes = [1, 5, 128], strides = [1, 1, 1]} : vector<8x5x128xf32> to vector<1x5x128xf32>
    %189 = vector.shape_cast %188 : vector<1x5x128xf32> to vector<5x128xf32>
    %190 = vector.extract_strided_slice %187 {offsets = [0, 0], sizes = [1, 128], strides = [1, 1]} : vector<5x128xf32> to vector<1x128xf32>
    %191 = vector.broadcast %0 : vector<5x1xf32> to vector<5x128xf32>
    %192 = vector.broadcast %190 : vector<1x128xf32> to vector<5x128xf32>
    %193 = arith.mulf %191, %192 : vector<5x128xf32>
    %194 = arith.addf %189, %193 : vector<5x128xf32>
    %195 = vector.extract_strided_slice %187 {offsets = [1, 0], sizes = [1, 128], strides = [1, 1]} : vector<5x128xf32> to vector<1x128xf32>
    %196 = vector.broadcast %1 : vector<5x1xf32> to vector<5x128xf32>
    %197 = vector.broadcast %195 : vector<1x128xf32> to vector<5x128xf32>
    %198 = arith.mulf %196, %197 : vector<5x128xf32>
    %199 = arith.addf %194, %198 : vector<5x128xf32>
    %200 = vector.extract_strided_slice %187 {offsets = [2, 0], sizes = [1, 128], strides = [1, 1]} : vector<5x128xf32> to vector<1x128xf32>
    %201 = vector.broadcast %2 : vector<5x1xf32> to vector<5x128xf32>
    %202 = vector.broadcast %200 : vector<1x128xf32> to vector<5x128xf32>
    %203 = arith.mulf %201, %202 : vector<5x128xf32>
    %204 = arith.addf %199, %203 : vector<5x128xf32>
    %205 = vector.extract_strided_slice %187 {offsets = [3, 0], sizes = [1, 128], strides = [1, 1]} : vector<5x128xf32> to vector<1x128xf32>
    %206 = vector.broadcast %3 : vector<5x1xf32> to vector<5x128xf32>
    %207 = vector.broadcast %205 : vector<1x128xf32> to vector<5x128xf32>
    %208 = arith.mulf %206, %207 : vector<5x128xf32>
    %209 = arith.addf %204, %208 : vector<5x128xf32>
    %210 = vector.extract_strided_slice %187 {offsets = [4, 0], sizes = [1, 128], strides = [1, 1]} : vector<5x128xf32> to vector<1x128xf32>
    %211 = vector.broadcast %4 : vector<5x1xf32> to vector<5x128xf32>
    %212 = vector.broadcast %210 : vector<1x128xf32> to vector<5x128xf32>
    %213 = arith.mulf %211, %212 : vector<5x128xf32>
    %214 = arith.addf %209, %213 : vector<5x128xf32>
    %215 = math.tanh %214 : vector<5x128xf32>
    %cst = arith.constant 0.000000e+00 : f32
    %216 = vector.broadcast %cst : f32 to vector<5x128xf32>
    %217 = arith.maximumf %215, %216 : vector<5x128xf32>
    %218 = vector.broadcast %7 : vector<5x1xf32> to vector<5x128xf32>
    %219 = arith.mulf %217, %218 : vector<5x128xf32>
    %cst_12 = arith.constant dense<0.000000e+00> : vector<128xf32>
    %220 = vector.multi_reduction <add>, %219, %cst_12 [0] : vector<5x128xf32> to vector<128xf32>
    %221 = vector.shape_cast %220 : vector<128xf32> to vector<1x128xf32>
    %222 = vector.broadcast %8 : vector<1x1xf32> to vector<1x128xf32>
    %223 = arith.addf %221, %222 : vector<1x128xf32>
    %c0_13 = arith.constant 0 : index
    %c0_14 = arith.constant 0 : index
    %224 = vector.load %arg2[%c0_13, %c0_14] : memref<1x128xf32, #tpu.memory_space<vmem>>, vector<1x128xf32>
    tpu.vector_store %arg2[%c0_13, %c0_14], %223 {strides = array<i32>} : memref<1x128xf32, #tpu.memory_space<vmem>>, vector<1x128xf32>,
    return
  }
}

</mosaic_0001>

<llo_original>
// kernel: tpu_custom_call.1
$region0: #{tpu_custom_call.1}
  #allocation0 [shape = 'u32[]', space=smem, size = 0x4, offset = 0x4, fixed_abs, tag = 'smem constant byte address 0x4 - core index']
  #allocation1 [shape = 'u32[144,128]{1,0:T(1,128)}', space=vmem, size = 0x12000, scoped, tag = 'internal scratch']
  %s0 = inlined_call_operand.hbm [shape: f32[8,1,128], index: 0, kind: input, shape index: {}]
  %s1 = inlined_call_operand.hbm [shape: f32[5,9], index: 1, kind: input, shape index: {}]
  %s2 = inlined_call_operand.hbm [shape: f32[1,128], index: 2, kind: output, shape index: {}]
  %s3 = sld [smem:[#allocation0]]
  $region26: #{tpu_custom_call.1} parent=0
    _
  %s5 = ssub.s32 1, %s3
  %s6 = scalar_select 0, %s5, %s3
  $region1: #{tpu_custom_call.1} parent=0
    #allocation2 [shape = 'u8[4096]{0}', space=vmem, size = 0x1000, scoped, tag = 'input window, operand 0, single buffered']
    #allocation3 [shape = 's32[1]{0}', space=sflag, size = 0x4, scoped, tag = 'scoped memory for tpu_custom_call.1']
    #allocation4 [shape = 's32[1]{0}', space=sflag, size = 0x4, scoped, tag = 'scoped memory for tpu_custom_call.1']
    #allocation5 [shape = 'u8[4096]{0}', space=vmem, size = 0x1000, scoped, tag = 'input window, operand 1, single buffered']
    #allocation6 [shape = 's32[1]{0}', space=sflag, size = 0x4, scoped, tag = 'scoped memory for tpu_custom_call.1']
    #allocation7 [shape = 'u8[512]{0}', space=vmem, size = 0x400, scoped, tag = 'output window, operand 0, single buffered']
    %7 = vsyncpa [#allocation3], 0
    %8 = vsyncpa [#allocation6], 0
    %9 = vsyncpa [#allocation4], 0
    // Predicated region
    $region2: #{tpu_custom_call.1} parent=1 // pred_check
      _
    $region3: #{tpu_custom_call.1} parent=1 // pred_check_branch
      %11 = sbr.rel (0) target = $region5
    $region4: #{tpu_custom_call.1} parent=1 // pred_region
      %s13 = ssub.s32 128, 128
      %14 = vsyncadd [#allocation3], %s13
      %s15 = sshll.u32 [#allocation2], 4
      %s16 = int_to_ptr.vmem [resolvable:$true] %s15
      %21 = dma.hbm_to_vmem [thread:$0]  %s0, 128, %s16, [#allocation3], 16, 16, 1
    $region5: #{tpu_custom_call.1} parent=1 // pred_fallthru
      _
    // Predicated region
    $region6: #{tpu_custom_call.1} parent=1 // pred_check
      _
    $region7: #{tpu_custom_call.1} parent=1 // pred_check_branch
      %23 = sbr.rel (0) target = $region9
    $region8: #{tpu_custom_call.1} parent=1 // pred_region
      %s25 = ssub.s32 128, 128
      %26 = vsyncadd [#allocation6], %s25
      %s28 = sshll.u32 [#allocation5], 4
      %s29 = int_to_ptr.vmem [resolvable:$true] %s28
      %31 = dma.hbm_to_vmem [thread:$0]  %s1, 128, %s29, [#allocation6]
    $region9: #{tpu_custom_call.1} parent=1 // pred_fallthru
      _
    // Predicated region
    $region10: #{tpu_custom_call.1} parent=1 // pred_check
      _
    $region11: #{tpu_custom_call.1} parent=1 // pred_check_branch
      %33 = sbr.rel (0) target = $region13
    $region12: #{tpu_custom_call.1} parent=1 // pred_region
      %34 = dma.done [#allocation3], 128
    $region13: #{tpu_custom_call.1} parent=1 // pred_fallthru
      _
    // Predicated region
    $region14: #{tpu_custom_call.1} parent=1 // pred_check
      _
    $region15: #{tpu_custom_call.1} parent=1 // pred_check_branch
      %36 = sbr.rel (0) target = $region17
    $region16: #{tpu_custom_call.1} parent=1 // pred_region
      %37 = dma.done [#allocation6], 128
    $region17: #{tpu_custom_call.1} parent=1 // pred_fallthru
      _
    %v38 = vld [vmem:[#allocation5] sm:$0x1f]
    %v39 = vld [vmem:[#allocation5] sm:$0x1]
    %v40 = vld [vmem:[#allocation2] sm:$0x1]
    %v41 = vld [vmem:[#allocation2 + $0x1] sm:$0x1]
    %v42 = vld [vmem:[#allocation2 + $0x2] sm:$0x1]
    %v43 = vld [vmem:[#allocation2 + $0x3] sm:$0x1]
    %v44 = vld [vmem:[#allocation2 + $0x4] sm:$0x1]
    %v45 = vld [vmem:[#allocation2 + $0x5] sm:$0x1]
    %v46 = vld [vmem:[#allocation2 + $0x6] sm:$0x1]
    %v47 = vld [vmem:[#allocation2 + $0x7] sm:$0x1]
    %v56 = vlaneseq
    %v57 = vshrl.u32 %v56, 7
    %v58 = vsub.s32 0, %v57
    %v59 = vrot.slane %v40, %v58
    %v60 = vlaneseq
    %v61 = vshrl.u32 %v60, 7
    %v62 = vsub.s32 0, %v61
    %v63 = vrot.slane %v41, %v62
    %v64 = vlaneseq
    %v65 = vshrl.u32 %v64, 7
    %v66 = vsub.s32 0, %v65
    %v67 = vrot.slane %v42, %v66
    %v68 = vlaneseq
    %v69 = vshrl.u32 %v68, 7
    %v70 = vsub.s32 0, %v69
    %v71 = vrot.slane %v43, %v70
    %v72 = vlaneseq
    %v73 = vshrl.u32 %v72, 7
    %v74 = vsub.s32 0, %v73
    %v75 = vrot.slane %v44, %v74
    %v76 = vlaneseq
    %v77 = vshrl.u32 %v76, 7
    %v78 = vsub.s32 0, %v77
    %v79 = vrot.slane %v45, %v78
    %v80 = vlaneseq
    %v81 = vshrl.u32 %v80, 7
    %v82 = vsub.s32 0, %v81
    %v83 = vrot.slane %v46, %v82
    %v84 = vlaneseq
    %v85 = vshrl.u32 %v84, 7
    %v86 = vsub.s32 0, %v85
    %v87 = vrot.slane %v47, %v86
    %97 = vset.pattern.permute.xlu0 5
    %98 = vperm.xlu0 %97, %v38
    %v99 = vpop.permute.xlu0 %98
    %v101 = vmul.f32 %v59, %v99
    %v102 = vmul.f32 %v63, %v99
    %v103 = vmul.f32 %v67, %v99
    %v104 = vmul.f32 %v71, %v99
    %v105 = vmul.f32 %v75, %v99
    %v106 = vmul.f32 %v79, %v99
    %v107 = vmul.f32 %v83, %v99
    %v108 = vmul.f32 %v87, %v99
    %109 = vset.pattern.permute.xlu0 6
    %110 = vperm.xlu0 %109, %v38
    %v111 = vpop.permute.xlu0 %110
    %v113 = vadd.f32 %v101, %v111
    %v114 = vadd.f32 %v102, %v111
    %v115 = vadd.f32 %v103, %v111
    %v116 = vadd.f32 %v104, %v111
    %v117 = vadd.f32 %v105, %v111
    %v118 = vadd.f32 %v106, %v111
    %v119 = vadd.f32 %v107, %v111
    %v120 = vadd.f32 %v108, %v111
    %v121 = vtanh.pop %v113
    %122 = vset.pattern.permute.xlu0 0
    %123 = vperm.xlu0 %122, %v38
    %v124 = vpop.permute.xlu0 %123
    %v126 = vlaneseq
    %v127 = vshrl.u32 %v126, 7
    %v128 = vsub.s32 0, %v127
    %v129 = vrot.slane %v121, %v128
    %v130 = vmul.f32 %v124, %v129
    %v131 = vadd.f32 %v114, %v130
    %132 = vset.pattern.permute.xlu0 1
    %133 = vperm.xlu0 %132, %v38
    %v134 = vpop.permute.xlu0 %133
    %v136 = vlaneseq
    %v137 = vshrl.u32 %v136, 7
    %v138 = vsub.s32 1, %v137
    %v139 = vrot.slane %v121, %v138
    %v140 = vmul.f32 %v134, %v139
    %v141 = vadd.f32 %v131, %v140
    %142 = vset.pattern.permute.xlu0 2
    %143 = vperm.xlu0 %142, %v38
    %v144 = vpop.permute.xlu0 %143
    %v146 = vlaneseq
    %v147 = vshrl.u32 %v146, 7
    %v148 = vsub.s32 2, %v147
    %v149 = vrot.slane %v121, %v148
    %v150 = vmul.f32 %v144, %v149
    %v151 = vadd.f32 %v141, %v150
    %152 = vset.pattern.permute.xlu0 3
    %153 = vperm.xlu0 %152, %v38
    %v154 = vpop.permute.xlu0 %153
    %v156 = vlaneseq
    %v157 = vshrl.u32 %v156, 7
    %v158 = vsub.s32 3, %v157
    %v159 = vrot.slane %v121, %v158
    %v160 = vmul.f32 %v154, %v159
    %v161 = vadd.f32 %v151, %v160
    %162 = vset.pattern.permute.xlu0 4
    %163 = vperm.xlu0 %162, %v38
    %v164 = vpop.permute.xlu0 %163
    %v166 = vlaneseq
    %v167 = vshrl.u32 %v166, 7
    %v168 = vsub.s32 4, %v167
    %v169 = vrot.slane %v121, %v168
    %v170 = vmul.f32 %v164, %v169
    %v171 = vadd.f32 %v161, %v170
    %v172 = vtanh.pop %v171
    %v173 = vlaneseq
    %v174 = vshrl.u32 %v173, 7
    %v175 = vsub.s32 0, %v174
    %v176 = vrot.slane %v172, %v175
    %v177 = vmul.f32 %v124, %v176
    %v178 = vadd.f32 %v115, %v177
    %v179 = vlaneseq
    %v180 = vshrl.u32 %v179, 7
    %v181 = vsub.s32 1, %v180
    %v182 = vrot.slane %v172, %v181
    %v183 = vmul.f32 %v134, %v182
    %v184 = vadd.f32 %v178, %v183
    %v185 = vlaneseq
    %v186 = vshrl.u32 %v185, 7
    %v187 = vsub.s32 2, %v186
    %v188 = vrot.slane %v172, %v187
    %v189 = vmul.f32 %v144, %v188
    %v190 = vadd.f32 %v184, %v189
    %v191 = vlaneseq
    %v192 = vshrl.u32 %v191, 7
    %v193 = vsub.s32 3, %v192
    %v194 = vrot.slane %v172, %v193
    %v195 = vmul.f32 %v154, %v194
    %v196 = vadd.f32 %v190, %v195
    %v197 = vlaneseq
    %v198 = vshrl.u32 %v197, 7
    %v199 = vsub.s32 4, %v198
    %v200 = vrot.slane %v172, %v199
    %v201 = vmul.f32 %v164, %v200
    %v202 = vadd.f32 %v196, %v201
    %v203 = vtanh.pop %v202
    %v204 = vlaneseq
    %v205 = vshrl.u32 %v204, 7
    %v206 = vsub.s32 0, %v205
    %v207 = vrot.slane %v203, %v206
    %v208 = vmul.f32 %v124, %v207
    %v209 = vadd.f32 %v116, %v208
    %v210 = vlaneseq
    %v211 = vshrl.u32 %v210, 7
    %v212 = vsub.s32 1, %v211
    %v213 = vrot.slane %v203, %v212
    %v214 = vmul.f32 %v134, %v213
    %v215 = vadd.f32 %v209, %v214
    %v216 = vlaneseq
    %v217 = vshrl.u32 %v216, 7
    %v218 = vsub.s32 2, %v217
    %v219 = vrot.slane %v203, %v218
    %v220 = vmul.f32 %v144, %v219
    %v221 = vadd.f32 %v215, %v220
    %v222 = vlaneseq
    %v223 = vshrl.u32 %v222, 7
    %v224 = vsub.s32 3, %v223
    %v225 = vrot.slane %v203, %v224
    %v226 = vmul.f32 %v154, %v225
    %v227 = vadd.f32 %v221, %v226
    %v228 = vlaneseq
    %v229 = vshrl.u32 %v228, 7
    %v230 = vsub.s32 4, %v229
    %v231 = vrot.slane %v203, %v230
    %v232 = vmul.f32 %v164, %v231
    %v233 = vadd.f32 %v227, %v232
    %v234 = vtanh.pop %v233
    %v235 = vlaneseq
    %v236 = vshrl.u32 %v235, 7
    %v237 = vsub.s32 0, %v236
    %v238 = vrot.slane %v234, %v237
    %v239 = vmul.f32 %v124, %v238
    %v240 = vadd.f32 %v117, %v239
    %v241 = vlaneseq
    %v242 = vshrl.u32 %v241, 7
    %v243 = vsub.s32 1, %v242
    %v244 = vrot.slane %v234, %v243
    %v245 = vmul.f32 %v134, %v244
    %v246 = vadd.f32 %v240, %v245
    %v247 = vlaneseq
    %v248 = vshrl.u32 %v247, 7
    %v249 = vsub.s32 2, %v248
    %v250 = vrot.slane %v234, %v249
    %v251 = vmul.f32 %v144, %v250
    %v252 = vadd.f32 %v246, %v251
    %v253 = vlaneseq
    %v254 = vshrl.u32 %v253, 7
    %v255 = vsub.s32 3, %v254
    %v256 = vrot.slane %v234, %v255
    %v257 = vmul.f32 %v154, %v256
    %v258 = vadd.f32 %v252, %v257
    %v259 = vlaneseq
    %v260 = vshrl.u32 %v259, 7
    %v261 = vsub.s32 4, %v260
    %v262 = vrot.slane %v234, %v261
    %v263 = vmul.f32 %v164, %v262
    %v264 = vadd.f32 %v258, %v263
    %v265 = vtanh.pop %v264
    %v266 = vlaneseq
    %v267 = vshrl.u32 %v266, 7
    %v268 = vsub.s32 0, %v267
    %v269 = vrot.slane %v265, %v268
    %v270 = vmul.f32 %v124, %v269
    %v271 = vadd.f32 %v118, %v270
    %v272 = vlaneseq
    %v273 = vshrl.u32 %v272, 7
    %v274 = vsub.s32 1, %v273
    %v275 = vrot.slane %v265, %v274
    %v276 = vmul.f32 %v134, %v275
    %v277 = vadd.f32 %v271, %v276
    %v278 = vlaneseq
    %v279 = vshrl.u32 %v278, 7
    %v280 = vsub.s32 2, %v279
    %v281 = vrot.slane %v265, %v280
    %v282 = vmul.f32 %v144, %v281
    %v283 = vadd.f32 %v277, %v282
    %v284 = vlaneseq
    %v285 = vshrl.u32 %v284, 7
    %v286 = vsub.s32 3, %v285
    %v287 = vrot.slane %v265, %v286
    %v288 = vmul.f32 %v154, %v287
    %v289 = vadd.f32 %v283, %v288
    %v290 = vlaneseq
    %v291 = vshrl.u32 %v290, 7
    %v292 = vsub.s32 4, %v291
    %v293 = vrot.slane %v265, %v292
    %v294 = vmul.f32 %v164, %v293
    %v295 = vadd.f32 %v289, %v294
    %v296 = vtanh.pop %v295
    %v297 = vlaneseq
    %v298 = vshrl.u32 %v297, 7
    %v299 = vsub.s32 0, %v298
    %v300 = vrot.slane %v296, %v299
    %v301 = vmul.f32 %v124, %v300
    %v302 = vadd.f32 %v119, %v301
    %v303 = vlaneseq
    %v304 = vshrl.u32 %v303, 7
    %v305 = vsub.s32 1, %v304
    %v306 = vrot.slane %v296, %v305
    %v307 = vmul.f32 %v134, %v306
    %v308 = vadd.f32 %v302, %v307
    %v309 = vlaneseq
    %v310 = vshrl.u32 %v309, 7
    %v311 = vsub.s32 2, %v310
    %v312 = vrot.slane %v296, %v311
    %v313 = vmul.f32 %v144, %v312
    %v314 = vadd.f32 %v308, %v313
    %v315 = vlaneseq
    %v316 = vshrl.u32 %v315, 7
    %v317 = vsub.s32 3, %v316
    %v318 = vrot.slane %v296, %v317
    %v319 = vmul.f32 %v154, %v318
    %v320 = vadd.f32 %v314, %v319
    %v321 = vlaneseq
    %v322 = vshrl.u32 %v321, 7
    %v323 = vsub.s32 4, %v322
    %v324 = vrot.slane %v296, %v323
    %v325 = vmul.f32 %v164, %v324
    %v326 = vadd.f32 %v320, %v325
    %v327 = vtanh.pop %v326
    %v328 = vlaneseq
    %v329 = vshrl.u32 %v328, 7
    %v330 = vsub.s32 0, %v329
    %v331 = vrot.slane %v327, %v330
    %v332 = vmul.f32 %v124, %v331
    %v333 = vadd.f32 %v120, %v332
    %v334 = vlaneseq
    %v335 = vshrl.u32 %v334, 7
    %v336 = vsub.s32 1, %v335
    %v337 = vrot.slane %v327, %v336
    %v338 = vmul.f32 %v134, %v337
    %v339 = vadd.f32 %v333, %v338
    %v340 = vlaneseq
    %v341 = vshrl.u32 %v340, 7
    %v342 = vsub.s32 2, %v341
    %v343 = vrot.slane %v327, %v342
    %v344 = vmul.f32 %v144, %v343
    %v345 = vadd.f32 %v339, %v344
    %v346 = vlaneseq
    %v347 = vshrl.u32 %v346, 7
    %v348 = vsub.s32 3, %v347
    %v349 = vrot.slane %v327, %v348
    %v350 = vmul.f32 %v154, %v349
    %v351 = vadd.f32 %v345, %v350
    %v352 = vlaneseq
    %v353 = vshrl.u32 %v352, 7
    %v354 = vsub.s32 4, %v353
    %v355 = vrot.slane %v327, %v354
    %v356 = vmul.f32 %v164, %v355
    %v357 = vadd.f32 %v351, %v356
    %v358 = vtanh.pop %v357
    %v359 = vmax.f32 %v358, 0.0
    %360 = vset.pattern.permute.xlu0 7
    %361 = vperm.xlu0 %360, %v38
    %v362 = vpop.permute.xlu0 %361
    %v364 = vmul.f32 %v359, %v362
    %vm365 = vcmask 1044480
    %v366 = vsel %vm365, %v364, 0.0
    %v367 = vrot.slane %v366, 4
    %v368 = vadd.f32 %v366, %v367
    %v369 = vrot.slane %v368, 2
    %v370 = vadd.f32 %v368, %v369
    %v371 = vrot.slane %v370, 1
    %v372 = vadd.f32 %v370, %v371
    %374 = vset.pattern.permute.xlu0 8
    %375 = vperm.xlu0 %374, %v39
    %v376 = vpop.permute.xlu0 %375
    %v378 = vadd.f32 %v372, %v376
    %379 = vst [vmem:[#allocation7] sm:$0x1] %v378
    // Predicated region
    $region18: #{tpu_custom_call.1} parent=1 // pred_check
      _
    $region19: #{tpu_custom_call.1} parent=1 // pred_check_branch
      %381 = sbr.rel (0) target = $region21
    $region20: #{tpu_custom_call.1} parent=1 // pred_region
      %s383 = ssub.s32 16, 16
      %384 = vsyncadd [#allocation4], %s383
      %s386 = sshll.u32 [#allocation7], 4
      %s387 = int_to_ptr.vmem [resolvable:$true] %s386
      %389 = dma.vmem_to_hbm [thread:$0]  %s387, 16, %s2, [#allocation4]
    $region21: #{tpu_custom_call.1} parent=1 // pred_fallthru
      _
    // Predicated region
    $region22: #{tpu_custom_call.1} parent=1 // pred_check
      _
    $region23: #{tpu_custom_call.1} parent=1 // pred_check_branch
      %391 = sbr.rel (0) target = $region25
    $region24: #{tpu_custom_call.1} parent=1 // pred_region
      %392 = dma.done [#allocation4], 16
    $region25: #{tpu_custom_call.1} parent=1 // pred_fallthru
      _
    %393 = vsyncpa [#allocation3], 1
    %394 = vsyncpa [#allocation6], 1
    %395 = vsyncpa [#allocation4], 1

</llo_original>
